<compile_context>
chip_gen: v7x
topology: tpu7x:2x2x1
jax: 0.10.0
libtpu: 0.0.40
codegen_flags: <defaults>
</compile_context>

<pallas_src>
import math
from functools import partial

import jax
import jax.numpy as jnp
from jax.experimental import pallas as pl
from jax.experimental.pallas import tpu as pltpu

FEATURE_LEN = 16  # max_len of the positional-encoding table


def pe_add_kernel(x_ref, pe_ref, o_ref):
    """Pure streaming add on lane-dense (rows, B*D) tiles."""
    o_ref[...] = x_ref[...] + pe_ref[...]


def make_positional_encoding(d_model, max_len=FEATURE_LEN):
    """Deterministic sinusoidal table, identical math to the PyTorch __init__."""
    position = jnp.arange(max_len, dtype=jnp.float32)[:, None]                 # (max_len, 1)
    div_term = jnp.exp(
        jnp.arange(0, d_model, 2, dtype=jnp.float32) * (-math.log(10000.0) / d_model)
    )                                                                          # (d_model/2,)
    pe = jnp.zeros((max_len, d_model), dtype=jnp.float32)
    pe = pe.at[:, 0::2].set(jnp.sin(position * div_term))
    pe = pe.at[:, 1::2].set(jnp.cos(position * div_term))
    # PyTorch stores (max_len, 1, d_model); the batch broadcast is handled
    # wrapper-side by tiling the table across B (it is only a few KiB).
    return pe  # (max_len, d_model)


@partial(jax.jit, static_argnames=("row_block",))
def positional_encoding_forward(x, pe, *, row_block=512):
    """Forward pass: x + pe[:S] (broadcast over batch), then eval-mode dropout (identity).

    x:  (S, B, D) float32
    pe: (max_len, D) float32
    """
    # TODO(synk): nn.Dropout(p=0.1) in training mode is stochastic; a training
    # kernel would add pltpu.prng_seed / pltpu.prng_random_bits + 1/(1-p)
    # scaling.  This reproduces eval-mode semantics (identity).
    S, B, D = x.shape
    BD = B * D

    # Lane-dense 2-D views: x -> (S, B*D); pe -> (max_len, B*D) by tiling the
    # tiny table across the batch axis once, outside the kernel.
    x2 = x.reshape(S, BD)
    pe2 = jnp.tile(pe, (1, B)).astype(x.dtype)            # (max_len, B*D)

    # Row tile: largest block within the VMEM budget; full S for small inputs.
    ts = S if S <= row_block else row_block               # row_block is 8-aligned
    if ts % 8 != 0:
        # Only reachable when ts == S; slice pe so its block equals its full
        # dims and the (8, 128) BlockSpec divisibility rule is satisfied.
        pe2 = pe2[:S]
    grid = (pl.cdiv(S, ts),)

    # VMEM budget: double-buffered x-in + out + resident/double-buffered pe
    # tile, with headroom.  Cap at 48 MiB so it fits v7x's 64 MiB VMEM.
    itemsize = jnp.dtype(x.dtype).itemsize
    tile_bytes = ts * BD * itemsize
    vmem_limit = int(min(max(6 * tile_bytes + (1 << 20), 8 << 20), 48 << 20))

    out2 = pl.pallas_call(
        pe_add_kernel,
        out_shape=jax.ShapeDtypeStruct((S, BD), x.dtype),
        grid=grid,
        in_specs=[
            pl.BlockSpec((ts, BD), lambda i: (i, 0)),      # x rows stream through VMEM
            pl.BlockSpec((ts, BD), lambda i: (i, 0)),      # pe rows picked by index_map
        ],
        out_specs=pl.BlockSpec((ts, BD), lambda i: (i, 0)),
        input_output_aliases={0: 0},                       # output reuses x2's buffer
        compiler_params=pltpu.CompilerParams(
            dimension_semantics=("parallel",),
            vmem_limit_bytes=vmem_limit,
        ),
    )(x2, pe2)

    return out2.reshape(S, B, D)


if __name__ == "__main__":
    # Small shapes consistent with the module: seq=8, batch=2, d_model=32.
    S, B, D = 8, 2, 32

    key = jax.random.PRNGKey(0)
    x = jax.random.normal(key, (S, B, D), dtype=jnp.float32)

    pe = make_positional_encoding(d_model=D, max_len=FEATURE_LEN)

    out = positional_encoding_forward(x, pe)
    out = jax.block_until_ready(out)

    # Reference: x + pe[:S] broadcast over batch (eval-mode dropout = identity).
    ref = x + pe[:S][:, None, :]
    assert out.shape == (S, B, D)
    assert jnp.allclose(out, ref, atol=1e-6), "mismatch vs reference"

    print("KERNEL_OK")
</pallas_src>

<mosaic_0001>
module attributes {stable_mosaic.version = 11 : i64} {
  func.func @pe_add_kernel(%arg0: i32, %arg1: memref<8x64xf32, #tpu.memory_space<vmem>>, %arg2: memref<8x64xf32, #tpu.memory_space<vmem>>, %arg3: memref<8x64xf32, #tpu.memory_space<vmem>>) attributes {dimension_semantics = [#tpu.dimension_semantics<parallel>], iteration_bounds = array<i64: 1>, scalar_prefetch = 0 : i64, scratch_operands = 0 : i64, tpu.core_type = #tpu.core_type<tc>, window_params = [{transform_indices = @transform_0, window_bounds = array<i64: 8, 64>}, {transform_indices = @transform_1, window_bounds = array<i64: 8, 64>}, {transform_indices = @transform_2, window_bounds = array<i64: 8, 64>}]} {
    %c0 = arith.constant 0 : index
    %c0_0 = arith.constant 0 : index
    %0 = vector.load %arg1[%c0, %c0_0] : memref<8x64xf32, #tpu.memory_space<vmem>>, vector<8x64xf32>
    %c0_1 = arith.constant 0 : index
    %c0_2 = arith.constant 0 : index
    %1 = vector.load %arg2[%c0_1, %c0_2] : memref<8x64xf32, #tpu.memory_space<vmem>>, vector<8x64xf32>
    %2 = arith.addf %0, %1 : vector<8x64xf32>
    %c0_3 = arith.constant 0 : index
    %c0_4 = arith.constant 0 : index
    %3 = vector.load %arg3[%c0_3, %c0_4] : memref<8x64xf32, #tpu.memory_space<vmem>>, vector<8x64xf32>
    tpu.vector_store %arg3[%c0_3, %c0_4], %2 {strides = array<i32>} : memref<8x64xf32, #tpu.memory_space<vmem>>, vector<8x64xf32>,
    return
  }
  func.func @transform_0(%arg0: i32) -> (i32, i32) {
    %c0_i32 = arith.constant 0 : i32
    %c0_i32_0 = arith.constant 0 : i32
    return %arg0, %c0_i32 : i32, i32
  }
  func.func @transform_1(%arg0: i32) -> (i32, i32) {
    %c0_i32 = arith.constant 0 : i32
    %c0_i32_0 = arith.constant 0 : i32
    return %arg0, %c0_i32 : i32, i32
  }
  func.func @transform_2(%arg0: i32) -> (i32, i32) {
    %c0_i32 = arith.constant 0 : i32
    %c0_i32_0 = arith.constant 0 : i32
    return %arg0, %c0_i32 : i32, i32
  }
}

</mosaic_0001>

<llo_original>
// kernel: tile.9
$region0: #{tile.9}
  %s0 = inlined_call_operand.vmem [shape: f32[16,2,32], index: 0, kind: input, shape index: {}]
  %s1 = inlined_call_operand.vmem [shape: f32[16,64], index: 1, kind: output, shape index: {}]
  $region1: #{tile.9} parent=0
    #allocation0 [shape = 'u8[65536]{0}', space=vmem, size = 0x10000, scoped, tag = 'scoped mem for input reshape']
    %s3 = sshllo.u32 0, 2
    %s4 = smul.addr 2, 15
    %s5 = scalar_lea.vmem %s0, %s4
    %v6 = vld [vmem:[%s5] sm:%s3]
    %s7 = scalar_lea.vmem [#allocation0], 120
    %8 = vst [vmem:[%s7] sm:%s3] %v6
    %s9 = smul.addr 2, 14
    %s10 = scalar_lea.vmem %s0, %s9
    %v11 = vld [vmem:[%s10] sm:%s3]
    %s12 = scalar_lea.vmem [#allocation0], 112
    %13 = vst [vmem:[%s12] sm:%s3] %v11
    %s14 = smul.addr 2, 13
    %s15 = scalar_lea.vmem %s0, %s14
    %v16 = vld [vmem:[%s15] sm:%s3]
    %s17 = scalar_lea.vmem [#allocation0], 104
    %18 = vst [vmem:[%s17] sm:%s3] %v16
    %s19 = smul.addr 2, 12
    %s20 = scalar_lea.vmem %s0, %s19
    %v21 = vld [vmem:[%s20] sm:%s3]
    %s22 = scalar_lea.vmem [#allocation0], 96
    %23 = vst [vmem:[%s22] sm:%s3] %v21
    %s24 = smul.addr 2, 11
    %s25 = scalar_lea.vmem %s0, %s24
    %v26 = vld [vmem:[%s25] sm:%s3]
    %s27 = scalar_lea.vmem [#allocation0], 88
    %28 = vst [vmem:[%s27] sm:%s3] %v26
    %s29 = smul.addr 2, 10
    %s30 = scalar_lea.vmem %s0, %s29
    %v31 = vld [vmem:[%s30] sm:%s3]
    %s32 = scalar_lea.vmem [#allocation0], 80
    %33 = vst [vmem:[%s32] sm:%s3] %v31
    %s34 = smul.addr 2, 9
    %s35 = scalar_lea.vmem %s0, %s34
    %v36 = vld [vmem:[%s35] sm:%s3]
    %s37 = scalar_lea.vmem [#allocation0], 72
    %38 = vst [vmem:[%s37] sm:%s3] %v36
    %s39 = smul.addr 2, 8
    %s40 = scalar_lea.vmem %s0, %s39
    %v41 = vld [vmem:[%s40] sm:%s3]
    %s42 = scalar_lea.vmem [#allocation0], 64
    %43 = vst [vmem:[%s42] sm:%s3] %v41
    %s44 = smul.addr 2, 7
    %s45 = scalar_lea.vmem %s0, %s44
    %v46 = vld [vmem:[%s45] sm:%s3]
    %s47 = scalar_lea.vmem [#allocation0], 56
    %48 = vst [vmem:[%s47] sm:%s3] %v46
    %s49 = smul.addr 2, 6
    %s50 = scalar_lea.vmem %s0, %s49
    %v51 = vld [vmem:[%s50] sm:%s3]
    %s52 = scalar_lea.vmem [#allocation0], 48
    %53 = vst [vmem:[%s52] sm:%s3] %v51
    %s54 = smul.addr 2, 5
    %s55 = scalar_lea.vmem %s0, %s54
    %v56 = vld [vmem:[%s55] sm:%s3]
    %s57 = scalar_lea.vmem [#allocation0], 40
    %58 = vst [vmem:[%s57] sm:%s3] %v56
    %s59 = smul.addr 2, 4
    %s60 = scalar_lea.vmem %s0, %s59
    %v61 = vld [vmem:[%s60] sm:%s3]
    %s62 = scalar_lea.vmem [#allocation0], 32
    %63 = vst [vmem:[%s62] sm:%s3] %v61
    %s64 = smul.addr 2, 3
    %s65 = scalar_lea.vmem %s0, %s64
    %v66 = vld [vmem:[%s65] sm:%s3]
    %s67 = scalar_lea.vmem [#allocation0], 24
    %68 = vst [vmem:[%s67] sm:%s3] %v66
    %s69 = smul.addr 2, 2
    %s70 = scalar_lea.vmem %s0, %s69
    %v71 = vld [vmem:[%s70] sm:%s3]
    %s72 = scalar_lea.vmem [#allocation0], 16
    %73 = vst [vmem:[%s72] sm:%s3] %v71
    %s74 = scalar_lea.vmem %s0, 2
    %v75 = vld [vmem:[%s74] sm:%s3]
    %s76 = scalar_lea.vmem [#allocation0], 8
    %77 = vst [vmem:[%s76] sm:%s3] %v75
    %v78 = vld [vmem:[%s0] sm:%s3]
    %79 = vst [vmem:[#allocation0] sm:%s3] %v78
    %v80 = vld [vmem:[#allocation0] ss:$8 sm:$0xf]
    %v81 = vld [vmem:[#allocation0] ss:$8 sm:$0xf0]
    %vm82 = vcmask 1047556
    %v83 = vsel %vm82, %v81, %v80
    %vm84 = vcmask 261120
    %85 = vst.msk [vmem:[%s1] sm:$0xff] %vm84, %v83
    %s86 = scalar_lea.vmem [#allocation0], 64
    %v87 = vld [vmem:[%s86] ss:$8 sm:$0xf]
    %s88 = scalar_lea.vmem [#allocation0], 64
    %v89 = vld [vmem:[%s88] ss:$8 sm:$0xf0]
    %vm90 = vcmask 1047556
    %v91 = vsel %vm90, %v89, %v87
    %vm92 = vcmask 261120
    %s93 = scalar_lea.vmem %s1, 8
    %94 = vst.msk [vmem:[%s93] sm:$0xff] %vm92, %v91
    %s95 = scalar_lea.vmem [#allocation0], 1
    %v96 = vld [vmem:[%s95] ss:$8 sm:$0xf]
    %s97 = scalar_lea.vmem [#allocation0], 1
    %v98 = vld [vmem:[%s97] ss:$8 sm:$0xf0]
    %vm99 = vcmask 1047556
    %v100 = vsel %vm99, %v98, %v96
    %101 = vrot.lane.b32.xlu0 %v100, 32
    %v102 = vpop.permute.xlu0 %101
    %vm103 = vcmask 523520
    %104 = vst.msk [vmem:[%s1] sm:$0xff] %vm103, %v102
    %s105 = scalar_lea.vmem [#allocation0], 65
    %v106 = vld [vmem:[%s105] ss:$8 sm:$0xf]
    %s107 = scalar_lea.vmem [#allocation0], 65
    %v108 = vld [vmem:[%s107] ss:$8 sm:$0xf0]
    %vm109 = vcmask 1047556
    %v110 = vsel %vm109, %v108, %v106
    %111 = vrot.lane.b32.xlu0 %v110, 32
    %v112 = vpop.permute.xlu0 %111
    %vm113 = vcmask 523520
    %s114 = scalar_lea.vmem %s1, 8
    %115 = vst.msk [vmem:[%s114] sm:$0xff] %vm113, %v112

// kernel: positional_encoding_forward.1
$region0: #{positional_encoding_forward.1}
  #allocation0 [shape = 'u32[]', space=smem, size = 0x4, offset = 0x4, fixed_abs, tag = 'smem constant byte address 0x4 - core index']
  #allocation1 [shape = 'u32[144,128]{1,0:T(1,128)}', space=vmem, size = 0x12000, scoped, tag = 'internal scratch']
  %s0 = inlined_call_operand.vmem [shape: f32[8,64], index: 0, kind: input, shape index: {}, may-alias: {0,2}]
  %s1 = inlined_call_operand.vmem [shape: f32[16,64], index: 1, kind: input, shape index: {}]
  %s2 = inlined_call_operand.vmem [shape: f32[8,64], index: 2, kind: output, shape index: {}, may-alias: {0,2}]
  %s3 = sld [smem:[#allocation0]]
  $region18: #{positional_encoding_forward.1} parent=0
    _
  %s5 = ssub.s32 1, %s3
  %s6 = scalar_select 0, %s5, %s3
  // Predicated region
  $region2: #{positional_encoding_forward.1} parent=0 // pred_check
    _
  $region3: #{positional_encoding_forward.1} parent=0 // pred_check_branch
    %8 = sbr.rel (0) target = $region5
  $region4: #{positional_encoding_forward.1} parent=0 // pred_region
    _
  $region5: #{positional_encoding_forward.1} parent=0 // pred_fallthru
    _
  // Predicated region
  $region6: #{positional_encoding_forward.1} parent=0 // pred_check
    _
  $region7: #{positional_encoding_forward.1} parent=0 // pred_check_branch
    %10 = sbr.rel (0) target = $region9
  $region8: #{positional_encoding_forward.1} parent=0 // pred_region
    _
  $region9: #{positional_encoding_forward.1} parent=0 // pred_fallthru
    _
  %v11 = vld [vmem:[%s0] sm:$0xff]
  %v12 = vld [vmem:[%s1] sm:$0xff]
  %v13 = vadd.f32 %v11, %v12
  %vm14 = vcmask 523264
  %15 = vst.msk [vmem:[%s2] sm:$0xff] %vm14, %v13
  // Predicated region
  $region10: #{positional_encoding_forward.1} parent=0 // pred_check
    _
  $region11: #{positional_encoding_forward.1} parent=0 // pred_check_branch
    %17 = sbr.rel (0) target = $region13
  $region12: #{positional_encoding_forward.1} parent=0 // pred_region
    _
  $region13: #{positional_encoding_forward.1} parent=0 // pred_fallthru
    _
  // Predicated region
  $region14: #{positional_encoding_forward.1} parent=0 // pred_check
    _
  $region15: #{positional_encoding_forward.1} parent=0 // pred_check_branch
    %19 = sbr.rel (0) target = $region17
  $region16: #{positional_encoding_forward.1} parent=0 // pred_region
    _
  $region17: #{positional_encoding_forward.1} parent=0 // pred_fallthru
    _

</llo_original>
